<compile_context>
chip_gen: v7x
topology: tpu7x:2x2x1
jax: 0.10.0
libtpu: 0.0.40
codegen_flags: <defaults>
</compile_context>

<pallas_src>
import jax
import jax.numpy as jnp
from jax.experimental import pallas as pl
from jax.experimental.pallas import tpu as pltpu

IN_F = 10
HID_F = 5
OUT_F = 2


def mlp_kernel(x_ref, wb1_ref, wb2_ref, o_ref):
    # ---- fc1 on the MXU: bf16 inputs, f32 accumulation ----
    x_bf16 = x_ref[...].astype(jnp.bfloat16)                  # (TM, 10)
    w1t_bf16 = wb1_ref[0:IN_F, :].astype(jnp.bfloat16)         # (10, 5)  static slice
    b1 = wb1_ref[IN_F:IN_F + 1, :]                             # (1, 5)   f32
    h = jnp.dot(x_bf16, w1t_bf16, preferred_element_type=jnp.float32) + b1
    h = jnp.maximum(h, 0.0)                                    # ReLU (f32, VPU)

    # ---- fc2 (5 -> 2) on the VPU: 5 broadcast fused multiply-adds (f32) ----
    w2t = wb2_ref[0:HID_F, :]                                  # (5, 2) f32
    b2 = wb2_ref[HID_F:HID_F + 1, :]                           # (1, 2) f32
    y = jnp.broadcast_to(b2, (h.shape[0], OUT_F))
    for k in range(HID_F):                                     # unrolled at trace time
        y = y + h[:, k:k + 1] * w2t[k:k + 1, :]
    o_ref[...] = y.astype(o_ref.dtype)


def prepare_params(w1, b1, w2, b2):
    """One-time, model-load-time packing (PyTorch shapes in).

    Keeps all transpose/reshape glue OUT of the per-call hot path and fuses
    each bias into its weight buffer (3 input DMAs total per forward call).
    """
    wb1 = jnp.concatenate([jnp.transpose(w1), b1.reshape(1, HID_F)], axis=0)  # (11, 5)
    wb2 = jnp.concatenate([jnp.transpose(w2), b2.reshape(1, OUT_F)], axis=0)  # (6, 2)
    return wb1.astype(jnp.float32), wb2.astype(jnp.float32)


def simple_model_forward(x, wb1, wb2, *, tm=512):
    """x: (B, 10) f32; wb1: (11, 5); wb2: (6, 2) from prepare_params."""
    B = x.shape[0]
    # Single full-batch block when the batch is small; otherwise tiles of 512
    # rows (multiple of 8 f32 sublanes).  A partial final tile is handled by
    # Pallas block masking (rows are independent, so padded rows are harmless).
    TM = B if B <= tm else tm
    grid = (pl.cdiv(B, TM),)

    return pl.pallas_call(
        mlp_kernel,
        out_shape=jax.ShapeDtypeStruct((B, OUT_F), x.dtype),
        grid=grid,
        in_specs=[
            pl.BlockSpec((TM, IN_F), lambda i: (i, 0)),          # batch-tiled x
            pl.BlockSpec((IN_F + 1, HID_F), lambda i: (0, 0)),   # VMEM-resident fc1
            pl.BlockSpec((HID_F + 1, OUT_F), lambda i: (0, 0)),  # VMEM-resident fc2
        ],
        out_specs=pl.BlockSpec((TM, OUT_F), lambda i: (i, 0)),
        compiler_params=pltpu.CompilerParams(
            dimension_semantics=("parallel",),                   # v7x: shard batch over 2 TCs
        ),
    )(x, wb1, wb2)


def init_params(key):
    """Deterministic init matching nn.Linear shapes (uniform like PyTorch)."""
    k1, k2, k3, k4 = jax.random.split(key, 4)
    bound1 = 1.0 / jnp.sqrt(10.0)
    bound2 = 1.0 / jnp.sqrt(5.0)
    w1 = jax.random.uniform(k1, (HID_F, IN_F), jnp.float32, -bound1, bound1)
    b1 = jax.random.uniform(k2, (HID_F,), jnp.float32, -bound1, bound1)
    w2 = jax.random.uniform(k3, (OUT_F, HID_F), jnp.float32, -bound2, bound2)
    b2 = jax.random.uniform(k4, (OUT_F,), jnp.float32, -bound2, bound2)
    return w1, b1, w2, b2


if __name__ == "__main__":
    key = jax.random.PRNGKey(0)
    k_x, k_p = jax.random.split(key)

    batch = 8
    x = jax.random.normal(k_x, (batch, IN_F), jnp.float32)
    w1, b1, w2, b2 = init_params(k_p)

    # One-time parameter packing (outside the hot path).
    wb1, wb2 = prepare_params(w1, b1, w2, b2)

    out = simple_model_forward(x, wb1, wb2)
    out = jax.block_until_ready(out)
    assert out.shape == (batch, OUT_F)

    # Reference 1: exact f32 PyTorch-semantics forward (tolerance covers the
    # bf16 MXU inputs used for layer 1; accumulation is f32).
    ref_f32 = jnp.maximum(x @ w1.T + b1, 0.0) @ w2.T + b2
    assert jnp.allclose(out, ref_f32, atol=5e-2, rtol=5e-2), "mismatch vs f32 reference"

    # Reference 2: matched precision (bf16 matmul inputs, f32 accumulation) — tight.
    h_ref = jnp.maximum(
        jnp.dot(x.astype(jnp.bfloat16), w1.T.astype(jnp.bfloat16),
                preferred_element_type=jnp.float32) + b1, 0.0)
    ref_matched = h_ref @ w2.T + b2
    assert jnp.allclose(out, ref_matched, atol=1e-4, rtol=1e-4), \
        "mismatch vs matched-precision reference"

    print("KERNEL_OK")
</pallas_src>

<mosaic_0001>
module attributes {stable_mosaic.version = 11 : i64} {
  func.func @mlp_kernel(%arg0: i32, %arg1: memref<8x10xf32, #tpu.memory_space<vmem>>, %arg2: memref<11x5xf32, #tpu.memory_space<vmem>>, %arg3: memref<6x2xf32, #tpu.memory_space<vmem>>, %arg4: memref<8x2xf32, #tpu.memory_space<vmem>>) attributes {dimension_semantics = [#tpu.dimension_semantics<parallel>], iteration_bounds = array<i64: 1>, scalar_prefetch = 0 : i64, scratch_operands = 0 : i64, tpu.core_type = #tpu.core_type<tc>, window_params = [{transform_indices = @transform_0, window_bounds = array<i64: 8, 10>}, {pipeline_mode = #tpu.pipeline_mode<synchronous>, transform_indices = @transform_1, window_bounds = array<i64: 11, 5>}, {pipeline_mode = #tpu.pipeline_mode<synchronous>, transform_indices = @transform_2, window_bounds = array<i64: 6, 2>}, {transform_indices = @transform_3, window_bounds = array<i64: 8, 2>}]} {
    %c0 = arith.constant 0 : index
    %c0_0 = arith.constant 0 : index
    %0 = vector.load %arg1[%c0, %c0_0] : memref<8x10xf32, #tpu.memory_space<vmem>>, vector<8x10xf32>
    %1 = arith.truncf %0 : vector<8x10xf32> to vector<8x10xbf16>
    %c0_1 = arith.constant 0 : index
    %c0_2 = arith.constant 0 : index
    %2 = vector.load %arg2[%c0_1, %c0_2] : memref<11x5xf32, #tpu.memory_space<vmem>>, vector<10x5xf32>
    %3 = arith.truncf %2 : vector<10x5xf32> to vector<10x5xbf16>
    %c10 = arith.constant 10 : index
    %c0_3 = arith.constant 0 : index
    %4 = vector.load %arg2[%c10, %c0_3] : memref<11x5xf32, #tpu.memory_space<vmem>>, vector<1x5xf32>
    %cst = arith.constant dense<0.000000e+00> : vector<8x5xf32>
    %5 = tpu.matmul %1, %3, %cst {dimension_numbers = #tpu.dot_dimension_numbers<[1], [0], [0], [1], [0, 0, 1, 1], [], []>} : vector<8x10xbf16>, vector<10x5xbf16>, vector<8x5xf32> -> vector<8x5xf32>
    %6 = vector.broadcast %4 : vector<1x5xf32> to vector<8x5xf32>
    %7 = arith.addf %5, %6 : vector<8x5xf32>
    %cst_4 = arith.constant 0.000000e+00 : f32
    %8 = vector.broadcast %cst_4 : f32 to vector<8x5xf32>
    %9 = arith.maximumf %7, %8 : vector<8x5xf32>
    %c0_5 = arith.constant 0 : index
    %c0_6 = arith.constant 0 : index
    %10 = vector.load %arg3[%c0_5, %c0_6] : memref<6x2xf32, #tpu.memory_space<vmem>>, vector<5x2xf32>
    %c5 = arith.constant 5 : index
    %c0_7 = arith.constant 0 : index
    %11 = vector.load %arg3[%c5, %c0_7] : memref<6x2xf32, #tpu.memory_space<vmem>>, vector<1x2xf32>
    %12 = vector.shape_cast %11 : vector<1x2xf32> to vector<1x2xf32>
    %13 = vector.broadcast %12 : vector<1x2xf32> to vector<8x2xf32>
    %14 = vector.extract_strided_slice %9 {offsets = [0, 0], sizes = [8, 1], strides = [1, 1]} : vector<8x5xf32> to vector<8x1xf32>
    %15 = vector.extract_strided_slice %10 {offsets = [0, 0], sizes = [1, 2], strides = [1, 1]} : vector<5x2xf32> to vector<1x2xf32>
    %16 = vector.broadcast %14 : vector<8x1xf32> to vector<8x2xf32>
    %17 = vector.broadcast %15 : vector<1x2xf32> to vector<8x2xf32>
    %18 = arith.mulf %16, %17 : vector<8x2xf32>
    %19 = arith.addf %13, %18 : vector<8x2xf32>
    %20 = vector.extract_strided_slice %9 {offsets = [0, 1], sizes = [8, 1], strides = [1, 1]} : vector<8x5xf32> to vector<8x1xf32>
    %21 = vector.extract_strided_slice %10 {offsets = [1, 0], sizes = [1, 2], strides = [1, 1]} : vector<5x2xf32> to vector<1x2xf32>
    %22 = vector.broadcast %20 : vector<8x1xf32> to vector<8x2xf32>
    %23 = vector.broadcast %21 : vector<1x2xf32> to vector<8x2xf32>
    %24 = arith.mulf %22, %23 : vector<8x2xf32>
    %25 = arith.addf %19, %24 : vector<8x2xf32>
    %26 = vector.extract_strided_slice %9 {offsets = [0, 2], sizes = [8, 1], strides = [1, 1]} : vector<8x5xf32> to vector<8x1xf32>
    %27 = vector.extract_strided_slice %10 {offsets = [2, 0], sizes = [1, 2], strides = [1, 1]} : vector<5x2xf32> to vector<1x2xf32>
    %28 = vector.broadcast %26 : vector<8x1xf32> to vector<8x2xf32>
    %29 = vector.broadcast %27 : vector<1x2xf32> to vector<8x2xf32>
    %30 = arith.mulf %28, %29 : vector<8x2xf32>
    %31 = arith.addf %25, %30 : vector<8x2xf32>
    %32 = vector.extract_strided_slice %9 {offsets = [0, 3], sizes = [8, 1], strides = [1, 1]} : vector<8x5xf32> to vector<8x1xf32>
    %33 = vector.extract_strided_slice %10 {offsets = [3, 0], sizes = [1, 2], strides = [1, 1]} : vector<5x2xf32> to vector<1x2xf32>
    %34 = vector.broadcast %32 : vector<8x1xf32> to vector<8x2xf32>
    %35 = vector.broadcast %33 : vector<1x2xf32> to vector<8x2xf32>
    %36 = arith.mulf %34, %35 : vector<8x2xf32>
    %37 = arith.addf %31, %36 : vector<8x2xf32>
    %38 = vector.extract_strided_slice %9 {offsets = [0, 4], sizes = [8, 1], strides = [1, 1]} : vector<8x5xf32> to vector<8x1xf32>
    %39 = vector.extract_strided_slice %10 {offsets = [4, 0], sizes = [1, 2], strides = [1, 1]} : vector<5x2xf32> to vector<1x2xf32>
    %40 = vector.broadcast %38 : vector<8x1xf32> to vector<8x2xf32>
    %41 = vector.broadcast %39 : vector<1x2xf32> to vector<8x2xf32>
    %42 = arith.mulf %40, %41 : vector<8x2xf32>
    %43 = arith.addf %37, %42 : vector<8x2xf32>
    %c0_8 = arith.constant 0 : index
    %c0_9 = arith.constant 0 : index
    %44 = vector.load %arg4[%c0_8, %c0_9] : memref<8x2xf32, #tpu.memory_space<vmem>>, vector<8x2xf32>
    tpu.vector_store %arg4[%c0_8, %c0_9], %43 {strides = array<i32>} : memref<8x2xf32, #tpu.memory_space<vmem>>, vector<8x2xf32>,
    return
  }
  func.func @transform_0(%arg0: i32) -> (i32, i32) {
    %c0_i32 = arith.constant 0 : i32
    %c0_i32_0 = arith.constant 0 : i32
    return %arg0, %c0_i32 : i32, i32
  }
  func.func @transform_1(%arg0: i32) -> (i32, i32) {
    %c0_i32 = arith.constant 0 : i32
    %c0_i32_0 = arith.constant 0 : i32
    %c0_i32_1 = arith.constant 0 : i32
    return %c0_i32, %c0_i32_0 : i32, i32
  }
  func.func @transform_2(%arg0: i32) -> (i32, i32) {
    %c0_i32 = arith.constant 0 : i32
    %c0_i32_0 = arith.constant 0 : i32
    %c0_i32_1 = arith.constant 0 : i32
    return %c0_i32, %c0_i32_0 : i32, i32
  }
  func.func @transform_3(%arg0: i32) -> (i32, i32) {
    %c0_i32 = arith.constant 0 : i32
    %c0_i32_0 = arith.constant 0 : i32
    return %arg0, %c0_i32 : i32, i32
  }
}

</mosaic_0001>

<llo_original>
// kernel: tpu_custom_call.1
$region0: #{tpu_custom_call.1}
  #allocation0 [shape = 'u32[]', space=smem, size = 0x4, offset = 0x4, fixed_abs, tag = 'smem constant byte address 0x4 - core index']
  #allocation1 [shape = 'u32[144,128]{1,0:T(1,128)}', space=vmem, size = 0x12000, scoped, tag = 'internal scratch']
  %s0 = inlined_call_operand.vmem [shape: f32[8,10], index: 0, kind: input, shape index: {}]
  %s1 = inlined_call_operand.vmem [shape: f32[11,5], index: 1, kind: input, shape index: {}]
  %s2 = inlined_call_operand.vmem [shape: f32[6,2], index: 2, kind: input, shape index: {}]
  %s3 = inlined_call_operand.vmem [shape: f32[8,2], index: 3, kind: output, shape index: {}]
  %s4 = sld [smem:[#allocation0]]
  $region22: #{tpu_custom_call.1} parent=0
    _
  %s6 = ssub.s32 1, %s4
  %s7 = scalar_select 0, %s6, %s4
  // Predicated region
  $region2: #{tpu_custom_call.1} parent=0 // pred_check
    _
  $region3: #{tpu_custom_call.1} parent=0 // pred_check_branch
    %9 = sbr.rel (0) target = $region5
  $region4: #{tpu_custom_call.1} parent=0 // pred_region
    _
  $region5: #{tpu_custom_call.1} parent=0 // pred_fallthru
    _
  // Predicated region
  $region6: #{tpu_custom_call.1} parent=0 // pred_check
    _
  $region7: #{tpu_custom_call.1} parent=0 // pred_check_branch
    %11 = sbr.rel (0) target = $region9
  $region8: #{tpu_custom_call.1} parent=0 // pred_region
    _
  $region9: #{tpu_custom_call.1} parent=0 // pred_fallthru
    _
  // Predicated region
  $region10: #{tpu_custom_call.1} parent=0 // pred_check
    _
  $region11: #{tpu_custom_call.1} parent=0 // pred_check_branch
    %13 = sbr.rel (0) target = $region13
  $region12: #{tpu_custom_call.1} parent=0 // pred_region
    _
  $region13: #{tpu_custom_call.1} parent=0 // pred_fallthru
    _
  %v15 = vld [vmem:[%s0] sm:$0xff]
  %v16 = vpack.c.bf16 %v15, %v15
  %v17 = vld [vmem:[%s1] sm:$0xff]
  %v18 = vld [vmem:[%s1 + $0x8] sm:$0x3]
  %v19 = vpack.c.bf16 %v18, %v17
  %v20 = vld [vmem:[%s1 + $0xa] sm:$0x1]
  %v21 = vlaneseq
  %v22 = vshrl.u32 %v21, 7
  %v23 = vsub.s32 0, %v22
  %v24 = vrot.slane %v20, %v23
  %vm25 = vcmask 80896
  %v27 = vsel %vm25, %v16, 0
  %vm29 = vcmask 1044480
  %v31 = vsel %vm29, %v19, 0
  %33 = vmatprep.subr.bf16.mxu0 0
  %34 = vmatpush1.bf16.msra.mxu0 %v31
  %35 = vmatprep.subr.bf16.mxu0 0
  %36 = vmatpush1.bf16.msra.mxu0 0
  %37 = vmatprep.subr.bf16.mxu0 0
  %38 = vmatpush1.bf16.msra.mxu0 0
  %39 = vmatprep.subr.bf16.mxu0 0
  %40 = vmatpush1.bf16.msra.mxu0 0
  %41 = vmatprep.subr.bf16.mxu0 0
  %42 = vmatpush1.bf16.msra.mxu0 0
  %43 = vmatprep.subr.bf16.mxu0 0
  %44 = vmatpush1.bf16.msra.mxu0 0
  %45 = vmatprep.subr.bf16.mxu0 0
  %46 = vmatpush1.bf16.msra.mxu0 0
  %47 = vmatprep.subr.bf16.mxu0 0
  %48 = vmatpush1.bf16.msra.mxu0 0
  %49 = vmatprep.subr.bf16.mxu0 0
  %50 = vmatpush1.bf16.msra.mxu0 0
  %51 = vmatprep.subr.bf16.mxu0 0
  %52 = vmatpush1.bf16.msra.mxu0 0
  %53 = vmatprep.subr.bf16.mxu0 0
  %54 = vmatpush1.bf16.msra.mxu0 0
  %55 = vmatprep.subr.bf16.mxu0 0
  %56 = vmatpush1.bf16.msra.mxu0 0
  %57 = vmatprep.subr.bf16.mxu0 0
  %58 = vmatpush1.bf16.msra.mxu0 0
  %59 = vmatprep.subr.bf16.mxu0 0
  %60 = vmatpush1.bf16.msra.mxu0 0
  %61 = vmatprep.subr.bf16.mxu0 0
  %62 = vmatpush1.bf16.msra.mxu0 0
  %63 = vmatprep.subr.bf16.mxu0 0
  %64 = vmatpush1.bf16.msra.mxu0 0
  %65 = vmatprep.mubr.bf16.mxu0 0
  %66 = vmatmul.mubr.bf16.gmra.mrb[0].mxu0 %v27
  %v67 = vpop.f32.mrb[0].mxu0
  %v68 = vadd.f32 %v24, %v67
  %v69 = vpop.f32.mrb[0].mxu0
  %v70 = vpop.f32.mrb[0].mxu0
  %v71 = vpop.f32.mrb[0].mxu0
  %72 = vdwg.mxu0
  %v73 = vmax.f32 %v68, 0.0
  %v74 = vld [vmem:[%s2] sm:$0x1f]
  %v75 = vld [vmem:[%s2 + $0x5] sm:$0x1]
  %v76 = vlaneseq
  %v77 = vshrl.u32 %v76, 7
  %v78 = vsub.s32 0, %v77
  %v79 = vrot.slane %v75, %v78
  %81 = vset.pattern.permute.xlu0 0
  %82 = vperm.xlu0 %81, %v73
  %v83 = vpop.permute.xlu0 %82
  %v85 = vlaneseq
  %v86 = vshrl.u32 %v85, 7
  %v87 = vsub.s32 0, %v86
  %v88 = vrot.slane %v74, %v87
  %v89 = vmul.f32 %v83, %v88
  %v90 = vadd.f32 %v79, %v89
  %91 = vset.pattern.permute.xlu0 1
  %92 = vperm.xlu0 %91, %v73
  %v93 = vpop.permute.xlu0 %92
  %v95 = vlaneseq
  %v96 = vshrl.u32 %v95, 7
  %v97 = vsub.s32 1, %v96
  %v98 = vrot.slane %v74, %v97
  %v99 = vmul.f32 %v93, %v98
  %v100 = vadd.f32 %v90, %v99
  %101 = vset.pattern.permute.xlu0 2
  %102 = vperm.xlu0 %101, %v73
  %v103 = vpop.permute.xlu0 %102
  %v105 = vlaneseq
  %v106 = vshrl.u32 %v105, 7
  %v107 = vsub.s32 2, %v106
  %v108 = vrot.slane %v74, %v107
  %v109 = vmul.f32 %v103, %v108
  %v110 = vadd.f32 %v100, %v109
  %111 = vset.pattern.permute.xlu0 3
  %112 = vperm.xlu0 %111, %v73
  %v113 = vpop.permute.xlu0 %112
  %v115 = vlaneseq
  %v116 = vshrl.u32 %v115, 7
  %v117 = vsub.s32 3, %v116
  %v118 = vrot.slane %v74, %v117
  %v119 = vmul.f32 %v113, %v118
  %v120 = vadd.f32 %v110, %v119
  %121 = vset.pattern.permute.xlu0 4
  %122 = vperm.xlu0 %121, %v73
  %v123 = vpop.permute.xlu0 %122
  %v125 = vlaneseq
  %v126 = vshrl.u32 %v125, 7
  %v127 = vsub.s32 4, %v126
  %v128 = vrot.slane %v74, %v127
  %v129 = vmul.f32 %v123, %v128
  %v130 = vadd.f32 %v120, %v129
  %vm131 = vcmask 15360
  %132 = vst.msk [vmem:[%s3] sm:$0xff] %vm131, %v130
  // Predicated region
  $region14: #{tpu_custom_call.1} parent=0 // pred_check
    _
  $region15: #{tpu_custom_call.1} parent=0 // pred_check_branch
    %134 = sbr.rel (0) target = $region17
  $region16: #{tpu_custom_call.1} parent=0 // pred_region
    _
  $region17: #{tpu_custom_call.1} parent=0 // pred_fallthru
    _
  // Predicated region
  $region18: #{tpu_custom_call.1} parent=0 // pred_check
    _
  $region19: #{tpu_custom_call.1} parent=0 // pred_check_branch
    %136 = sbr.rel (0) target = $region21
  $region20: #{tpu_custom_call.1} parent=0 // pred_region
    _
  $region21: #{tpu_custom_call.1} parent=0 // pred_fallthru
    _

</llo_original>
